<compile_context>
chip_gen: v7x
topology: tpu7x:2x2x1
jax: 0.10.0
libtpu: 0.0.40
codegen_flags: <defaults>
</compile_context>

<pallas_src>
from typing import NamedTuple

import jax
import jax.numpy as jnp
from jax.experimental import pallas as pl
from jax.experimental.pallas import tpu as pltpu

EMB_DIM = 100
LANE = 128


def _round_up(x, m):
    return (x + m - 1) // m * m


class SenderParams(NamedTuple):
    log_tab: jax.Array  # (NC_PAD, V_PAD) f32, zero-padded precomputed log-softmax table
    n_colors: int
    vocab: int


def make_sender_params(emb_table, fc_weight_t, fc_bias):
    """One-time prep: fold leaky_relu + fc + log_softmax into a padded table."""
    n_colors, _ = emb_table.shape
    vocab = fc_weight_t.shape[1]

    e = jax.nn.leaky_relu(emb_table)  # negative_slope=0.01 (PyTorch default)
    logits = jnp.dot(e, fc_weight_t, precision=jax.lax.Precision.HIGHEST) + fc_bias
    log_tab = jax.nn.log_softmax(logits, axis=-1)  # (n_colors, vocab), all finite

    nc_pad = _round_up(n_colors, LANE)
    v_pad = _round_up(vocab, LANE)
    # Zero padding is fine: padded rows are never selected by valid ids and
    # padded vocab lanes are sliced off after the kernel.
    log_tab = jnp.pad(log_tab, ((0, nc_pad - n_colors), (0, v_pad - vocab)))
    return SenderParams(log_tab.astype(jnp.float32), n_colors, vocab)


def sender_kernel(idx_ref, tab_ref, o_ref):
    # idx_ref: (TILE_B, 1)      int32  -- color ids for this batch tile
    # tab_ref: (NC_PAD, V_PAD)  f32    -- precomputed log-softmax table (resident)
    # o_ref:   (TILE_B, V_PAD)  f32    -- output tile (lane-dense store)
    idx = idx_ref[...]
    tile_b = idx.shape[0]
    nc_pad = tab_ref.shape[0]

    # One-hot gather on the MXU: exact (each row is 1*table_row + zeros).
    col = jax.lax.broadcasted_iota(jnp.int32, (tile_b, nc_pad), 1)
    onehot = (col == idx).astype(jnp.float32)  # (TILE_B, NC_PAD)
    o_ref[...] = jnp.dot(onehot, tab_ref[...], preferred_element_type=jnp.float32)


def _choose_tile_b(batch, max_tile=512):
    b_align = _round_up(max(batch, 1), 8)
    tile = min(b_align, max_tile)
    # If the whole batch fits in one max-size tile, split it in two >=256-row
    # tiles so v7x's two TensorCores both get work (neutral on v5e/v6e).
    if b_align == tile and tile >= 512:
        tile = _round_up(tile // 2, 8)
    return tile


def sender_forward(x, params: SenderParams, *, tile_b=None):
    """x: (B, F) float32; returns (B, 1, vocab) float32 (matches PyTorch output)."""
    B = x.shape[0]
    log_tab = params.log_tab
    nc_pad, v_pad = log_tab.shape
    vocab = params.vocab

    tb = tile_b if tile_b is not None else _choose_tile_b(B)
    tb = min(tb, _round_up(B, 8))
    b_pad = _round_up(B, tb)

    # x[:, 0:1].long(): truncation matches PyTorch for non-negative integer-valued ids.
    idx = x[:, 0].astype(jnp.int32)
    idx = jnp.pad(idx, (0, b_pad - B)).reshape(b_pad, 1)

    out = pl.pallas_call(
        sender_kernel,
        out_shape=jax.ShapeDtypeStruct((b_pad, v_pad), jnp.float32),
        grid=(b_pad // tb,),
        in_specs=[
            # Per-tile color ids.
            pl.BlockSpec((tb, 1), lambda i: (i, 0)),
            # Resident table: constant index_map -> DMA'd once, no per-step re-fetch.
            # TODO(synk): for very large vocab on v7x, add pipeline_mode=pl.Buffered(1)
            # on this constant block and/or raise vmem_limit_bytes.
            pl.BlockSpec((nc_pad, v_pad), lambda i: (0, 0)),
        ],
        out_specs=pl.BlockSpec((tb, v_pad), lambda i: (i, 0)),
        compiler_params=pltpu.CompilerParams(
            dimension_semantics=("parallel",),
        ),
    )(idx, log_tab)

    # Drop batch/vocab padding; PyTorch keeps the size-1 "sequence" dim from x[:, 0:1].
    return out[:B, :vocab].reshape(B, 1, vocab)


def sender_forward_ref(x, emb_table, fc_weight_t, fc_bias):
    """Pure-JAX reference (direct translation of the PyTorch forward)."""
    idx = x[:, 0:1].astype(jnp.int32)                       # (B, 1)
    e = jnp.take(emb_table, idx, axis=0)                    # (B, 1, 100)
    e = jax.nn.leaky_relu(e)
    y = jnp.einsum("bse,ev->bsv", e, fc_weight_t,
                   precision=jax.lax.Precision.HIGHEST) + fc_bias
    return jax.nn.log_softmax(y, axis=-1)


if __name__ == "__main__":
    n_colors = 8
    vocab_size = 16
    batch = 4

    key = jax.random.PRNGKey(0)
    k_emb, k_w, k_b, k_idx, k_rest = jax.random.split(key, 5)

    # Deterministic synthetic parameters (shapes from Sender.__init__).
    emb_table = jax.random.normal(k_emb, (n_colors, EMB_DIM), jnp.float32) * 0.1
    fc_weight_t = jax.random.normal(k_w, (EMB_DIM, vocab_size), jnp.float32) * 0.1
    fc_bias = jax.random.normal(k_b, (vocab_size,), jnp.float32) * 0.1

    # Input: (B, F) float; column 0 carries the (integer-valued) color id.
    color_ids = jax.random.randint(k_idx, (batch, 1), 0, n_colors).astype(jnp.float32)
    extra = jax.random.normal(k_rest, (batch, 3), jnp.float32)
    x = jnp.concatenate([color_ids, extra], axis=1)  # (B, 4)

    # One-time param prep (hoisted out of the per-call path).
    params = make_sender_params(emb_table, fc_weight_t, fc_bias)

    out = sender_forward(x, params)
    out = jax.block_until_ready(out)

    ref = sender_forward_ref(x, emb_table, fc_weight_t, fc_bias)
    assert out.shape == (batch, 1, vocab_size)
    assert jnp.allclose(out, ref, atol=1e-5, rtol=1e-5), "mismatch vs reference"

    print("KERNEL_OK")
</pallas_src>

<mosaic_0001>
module attributes {stable_mosaic.version = 11 : i64} {
  func.func @sender_kernel(%arg0: i32, %arg1: memref<8x1xi32, #tpu.memory_space<vmem>>, %arg2: memref<128x128xf32, #tpu.memory_space<vmem>>, %arg3: memref<8x128xf32, #tpu.memory_space<vmem>>) attributes {dimension_semantics = [#tpu.dimension_semantics<parallel>], iteration_bounds = array<i64: 1>, scalar_prefetch = 0 : i64, scratch_operands = 0 : i64, tpu.core_type = #tpu.core_type<tc>, window_params = [{transform_indices = @transform_0, window_bounds = array<i64: 8, 1>}, {pipeline_mode = #tpu.pipeline_mode<synchronous>, transform_indices = @transform_1, window_bounds = array<i64: 128, 128>}, {transform_indices = @transform_2, window_bounds = array<i64: 8, 128>}]} {
    %c0 = arith.constant 0 : index
    %c0_0 = arith.constant 0 : index
    %0 = vector.load %arg1[%c0, %c0_0] : memref<8x1xi32, #tpu.memory_space<vmem>>, vector<8x1xi32>
    %1 = tpu.iota {dimensions = array<i32: 1>} : vector<8x128xi32>
    %2 = vector.broadcast %0 : vector<8x1xi32> to vector<8x128xi32>
    %3 = arith.cmpi eq, %1, %2 : vector<8x128xi32>
    %4 = arith.extui %3 : vector<8x128xi1> to vector<8x128xi32>
    %5 = arith.sitofp %4 : vector<8x128xi32> to vector<8x128xf32>
    %c0_1 = arith.constant 0 : index
    %c0_2 = arith.constant 0 : index
    %6 = vector.load %arg2[%c0_1, %c0_2] : memref<128x128xf32, #tpu.memory_space<vmem>>, vector<128x128xf32>
    %cst = arith.constant dense<0.000000e+00> : vector<8x128xf32>
    %7 = tpu.matmul %5, %6, %cst {dimension_numbers = #tpu.dot_dimension_numbers<[1], [0], [0], [1], [0, 0, 1, 1], [], []>} : vector<8x128xf32>, vector<128x128xf32>, vector<8x128xf32> -> vector<8x128xf32>
    %c0_3 = arith.constant 0 : index
    %c0_4 = arith.constant 0 : index
    %8 = vector.load %arg3[%c0_3, %c0_4] : memref<8x128xf32, #tpu.memory_space<vmem>>, vector<8x128xf32>
    tpu.vector_store %arg3[%c0_3, %c0_4], %7 {strides = array<i32>} : memref<8x128xf32, #tpu.memory_space<vmem>>, vector<8x128xf32>,
    return
  }
  func.func @transform_0(%arg0: i32) -> (i32, i32) {
    %c0_i32 = arith.constant 0 : i32
    %c0_i32_0 = arith.constant 0 : i32
    return %arg0, %c0_i32 : i32, i32
  }
  func.func @transform_1(%arg0: i32) -> (i32, i32) {
    %c0_i32 = arith.constant 0 : i32
    %c0_i32_0 = arith.constant 0 : i32
    %c0_i32_1 = arith.constant 0 : i32
    return %c0_i32, %c0_i32_0 : i32, i32
  }
  func.func @transform_2(%arg0: i32) -> (i32, i32) {
    %c0_i32 = arith.constant 0 : i32
    %c0_i32_0 = arith.constant 0 : i32
    return %arg0, %c0_i32 : i32, i32
  }
}

</mosaic_0001>

<llo_original>
// kernel: tpu_custom_call.1
$region0: #{tpu_custom_call.1}
  #allocation0 [shape = 'u32[]', space=smem, size = 0x4, offset = 0x4, fixed_abs, tag = 'smem constant byte address 0x4 - core index']
  #allocation1 [shape = 'u32[144,128]{1,0:T(1,128)}', space=vmem, size = 0x12000, scoped, tag = 'internal scratch']
  %s0 = inlined_call_operand.vmem [shape: s32[8,1], index: 0, kind: input, shape index: {}]
  %s1 = inlined_call_operand.hbm [shape: f32[128,128], index: 1, kind: input, shape index: {}]
  %s2 = inlined_call_operand.hbm [shape: f32[8,128], index: 2, kind: output, shape index: {}]
  %s3 = sld [smem:[#allocation0]]
  $region22: #{tpu_custom_call.1} parent=0
    _
  %s5 = ssub.s32 1, %s3
  %s6 = scalar_select 0, %s5, %s3
  $region1: #{tpu_custom_call.1} parent=0
    #allocation2 [shape = 'u8[65536]{0}', space=vmem, size = 0x10000, scoped, tag = 'input window, operand 1, single buffered']
    #allocation3 [shape = 's32[1]{0}', space=sflag, size = 0x4, scoped, tag = 'scoped memory for tpu_custom_call.1']
    #allocation4 [shape = 's32[1]{0}', space=sflag, size = 0x4, scoped, tag = 'scoped memory for tpu_custom_call.1']
    #allocation5 [shape = 'u8[4096]{0}', space=vmem, size = 0x1000, scoped, tag = 'output window, operand 0, single buffered']
    %7 = vsyncpa [#allocation3], 0
    %8 = vsyncpa [#allocation4], 0
    // Predicated region
    $region2: #{tpu_custom_call.1} parent=1 // pred_check
      _
    $region3: #{tpu_custom_call.1} parent=1 // pred_check_branch
      %10 = sbr.rel (0) target = $region5
    $region4: #{tpu_custom_call.1} parent=1 // pred_region
      _
    $region5: #{tpu_custom_call.1} parent=1 // pred_fallthru
      _
    // Predicated region
    $region6: #{tpu_custom_call.1} parent=1 // pred_check
      _
    $region7: #{tpu_custom_call.1} parent=1 // pred_check_branch
      %12 = sbr.rel (0) target = $region9
    $region8: #{tpu_custom_call.1} parent=1 // pred_region
      %s14 = ssub.s32 2048, 2048
      %15 = vsyncadd [#allocation3], %s14
      %s16 = sshll.u32 [#allocation2], 4
      %s17 = int_to_ptr.vmem [resolvable:$true] %s16
      %22 = dma.hbm_to_vmem [thread:$0]  %s1, 2048, %s17, [#allocation3], 128, 128, 8
    $region9: #{tpu_custom_call.1} parent=1 // pred_fallthru
      _
    // Predicated region
    $region10: #{tpu_custom_call.1} parent=1 // pred_check
      _
    $region11: #{tpu_custom_call.1} parent=1 // pred_check_branch
      %24 = sbr.rel (0) target = $region13
    $region12: #{tpu_custom_call.1} parent=1 // pred_region
      %25 = dma.done [#allocation3], 2048
    $region13: #{tpu_custom_call.1} parent=1 // pred_fallthru
      _
    %v26 = vld [vmem:[%s0] sm:$0xff]
    %v27 = vlaneseq
    %v28 = vand.u32 %v27, 127
    %29 = vset.pattern.permute.xlu0 0
    %30 = vperm.xlu0 %29, %v26
    %v31 = vpop.permute.xlu0 %30
    %vm32 = vcmp.eq.s32.totalorder %v28, %v31
    %v33 = vsel %vm32, 1, 0
    %v34 = vcvt.s32.f32 %v33
    %v35 = vld [vmem:[#allocation2] sm:$0xff]
    %v36 = vld [vmem:[#allocation2 + $0x8] sm:$0xff]
    %v37 = vld [vmem:[#allocation2 + $0x10] sm:$0xff]
    %v38 = vld [vmem:[#allocation2 + $0x18] sm:$0xff]
    %v39 = vld [vmem:[#allocation2 + $0x20] sm:$0xff]
    %v40 = vld [vmem:[#allocation2 + $0x28] sm:$0xff]
    %v41 = vld [vmem:[#allocation2 + $0x30] sm:$0xff]
    %v42 = vld [vmem:[#allocation2 + $0x38] sm:$0xff]
    %v43 = vld [vmem:[#allocation2 + $0x40] sm:$0xff]
    %v44 = vld [vmem:[#allocation2 + $0x48] sm:$0xff]
    %v45 = vld [vmem:[#allocation2 + $0x50] sm:$0xff]
    %v46 = vld [vmem:[#allocation2 + $0x58] sm:$0xff]
    %v47 = vld [vmem:[#allocation2 + $0x60] sm:$0xff]
    %v48 = vld [vmem:[#allocation2 + $0x68] sm:$0xff]
    %v49 = vld [vmem:[#allocation2 + $0x70] sm:$0xff]
    %v50 = vld [vmem:[#allocation2 + $0x78] sm:$0xff]
    %51 = vmatprep.subr.mxu0 0.0
    %52 = vmatpush1.msra.mxu0 %v35
    %53 = vmatprep.subr.mxu0 0.0
    %54 = vmatpush1.msra.mxu0 %v36
    %55 = vmatprep.subr.mxu0 0.0
    %56 = vmatpush1.msra.mxu0 %v37
    %57 = vmatprep.subr.mxu0 0.0
    %58 = vmatpush1.msra.mxu0 %v38
    %59 = vmatprep.subr.mxu0 0.0
    %60 = vmatpush1.msra.mxu0 %v39
    %61 = vmatprep.subr.mxu0 0.0
    %62 = vmatpush1.msra.mxu0 %v40
    %63 = vmatprep.subr.mxu0 0.0
    %64 = vmatpush1.msra.mxu0 %v41
    %65 = vmatprep.subr.mxu0 0.0
    %66 = vmatpush1.msra.mxu0 %v42
    %67 = vmatprep.subr.mxu0 0.0
    %68 = vmatpush1.msra.mxu0 %v43
    %69 = vmatprep.subr.mxu0 0.0
    %70 = vmatpush1.msra.mxu0 %v44
    %71 = vmatprep.subr.mxu0 0.0
    %72 = vmatpush1.msra.mxu0 %v45
    %73 = vmatprep.subr.mxu0 0.0
    %74 = vmatpush1.msra.mxu0 %v46
    %75 = vmatprep.subr.mxu0 0.0
    %76 = vmatpush1.msra.mxu0 %v47
    %77 = vmatprep.subr.mxu0 0.0
    %78 = vmatpush1.msra.mxu0 %v48
    %79 = vmatprep.subr.mxu0 0.0
    %80 = vmatpush1.msra.mxu0 %v49
    %81 = vmatprep.subr.mxu0 0.0
    %82 = vmatpush1.msra.mxu0 %v50
    %83 = vmatprep.subr.mxu0 0.0
    %84 = vmatpush1.msra.mxu0 0.0
    %85 = vmatprep.subr.mxu0 0.0
    %86 = vmatpush1.msra.mxu0 0.0
    %87 = vmatprep.subr.mxu0 0.0
    %88 = vmatpush1.msra.mxu0 0.0
    %89 = vmatprep.subr.mxu0 0.0
    %90 = vmatpush1.msra.mxu0 0.0
    %91 = vmatprep.subr.mxu0 0.0
    %92 = vmatpush1.msra.mxu0 0.0
    %93 = vmatprep.subr.mxu0 0.0
    %94 = vmatpush1.msra.mxu0 0.0
    %95 = vmatprep.subr.mxu0 0.0
    %96 = vmatpush1.msra.mxu0 0.0
    %97 = vmatprep.subr.mxu0 0.0
    %98 = vmatpush1.msra.mxu0 0.0
    %99 = vmatprep.subr.mxu0 0.0
    %100 = vmatpush1.msra.mxu0 0.0
    %101 = vmatprep.subr.mxu0 0.0
    %102 = vmatpush1.msra.mxu0 0.0
    %103 = vmatprep.subr.mxu0 0.0
    %104 = vmatpush1.msra.mxu0 0.0
    %105 = vmatprep.subr.mxu0 0.0
    %106 = vmatpush1.msra.mxu0 0.0
    %107 = vmatprep.subr.mxu0 0.0
    %108 = vmatpush1.msra.mxu0 0.0
    %109 = vmatprep.subr.mxu0 0.0
    %110 = vmatpush1.msra.mxu0 0.0
    %111 = vmatprep.subr.mxu0 0.0
    %112 = vmatpush1.msra.mxu0 0.0
    %113 = vmatprep.subr.mxu0 0.0
    %114 = vmatpush1.msra.mxu0 0.0
    %115 = vmatprep.mubr.f32.mxu0 0.0
    %116 = vmatmul.mubr.f32.gmra.mrb[0].mxu0 %v34
    %v117 = vpop.f32.mrb[0].mxu0
    %v118 = vadd.f32 0.0, %v117
    %v119 = vpop.f32.mrb[0].mxu0
    %120 = vdwg.mxu0
    %121 = vst [vmem:[#allocation5] sm:$0xff] %v118
    // Predicated region
    $region14: #{tpu_custom_call.1} parent=1 // pred_check
      _
    $region15: #{tpu_custom_call.1} parent=1 // pred_check_branch
      %123 = sbr.rel (0) target = $region17
    $region16: #{tpu_custom_call.1} parent=1 // pred_region
      %s125 = ssub.s32 128, 128
      %126 = vsyncadd [#allocation4], %s125
      %s128 = sshll.u32 [#allocation5], 4
      %s129 = int_to_ptr.vmem [resolvable:$true] %s128
      %131 = dma.vmem_to_hbm [thread:$0]  %s129, 128, %s2, [#allocation4]
    $region17: #{tpu_custom_call.1} parent=1 // pred_fallthru
      _
    // Predicated region
    $region18: #{tpu_custom_call.1} parent=1 // pred_check
      _
    $region19: #{tpu_custom_call.1} parent=1 // pred_check_branch
      %133 = sbr.rel (0) target = $region21
    $region20: #{tpu_custom_call.1} parent=1 // pred_region
      %134 = dma.done [#allocation4], 128
    $region21: #{tpu_custom_call.1} parent=1 // pred_fallthru
      _
    %135 = vsyncpa [#allocation3], 1
    %136 = vsyncpa [#allocation4], 1

</llo_original>
